<compile_context>
chip_gen: v7x
topology: tpu7x:2x2x1
jax: 0.10.0
libtpu: 0.0.40
codegen_flags: <defaults>
</compile_context>

<pallas_src>
import functools

import jax
import jax.numpy as jnp
from jax import lax
from jax.experimental import pallas as pl
from jax.experimental.pallas import tpu as pltpu

_NEG_BIG = -1e30  # finite "minus infinity" so exp(m_prev - m_new) can never be NaN


def _round_up(x, m):
    return ((x + m - 1) // m) * m


def _choose_tiles(n, d_pad, block_q, block_k, itemsize, in_budget_bytes):
    """Pick (tq, tk, n_pad) with tq a multiple of tk and n_pad a multiple of tq."""
    n8 = _round_up(n, 8)
    if n8 <= block_k:
        tq = tk = n8
    else:
        tk = block_k
        tq = max(tk, (min(block_q, _round_up(n8, tk)) // tk) * tk)

        def in_bytes(tq_, tk_):
            # 2x: BlockSpec double-buffers each of the two feature inputs.
            return 2 * (tq_ + tk_) * d_pad * itemsize

        # VMEM budget (fits v5e 16 MiB scoped default / v7x 64 MiB physical).
        while tq > tk and in_bytes(tq, tk) > in_budget_bytes:
            tq -= tk
        # Keep >= 2 anchor blocks so the "parallel" axis can split across the
        # two TensorCores on v7x.
        while tq > tk and _round_up(n, tq) // tq < 2:
            tq -= tk
    n_pad = _round_up(n, tq)
    return tq, tk, n_pad


def _supcon_kernel(a_row_ref, a_col_ref, out_ref, m_sc, l_sc, s_sc, *,
                   n_valid, bsz, n_views, n_pos, inv_temp, out_scale):
    i = pl.program_id(0)          # anchor (row) block   -- "parallel"
    k = pl.program_id(1)          # contrast (col) block -- reduction ("arbitrary")
    tq = a_row_ref.shape[0]
    tk = a_col_ref.shape[0]

    @pl.when(k == 0)
    def _init():
        m_sc[...] = jnp.full(m_sc.shape, _NEG_BIG, dtype=jnp.float32)
        l_sc[...] = jnp.zeros(l_sc.shape, dtype=jnp.float32)
        s_sc[...] = jnp.zeros(s_sc.shape, dtype=jnp.float32)

    # sim = (A_i @ A_k^T) / temperature.  Operands stay in their (bf16) input
    # dtype on the MXU; contraction on dim 1 of both operands (no transpose
    # materialized); accumulation and the 1/T scale in f32.
    sim = lax.dot_general(
        a_row_ref[...], a_col_ref[...],
        dimension_numbers=(((1,), (1,)), ((), ())),
        preferred_element_type=jnp.float32) * inv_temp

    # Structural masks generated purely from iota (no mask DMAs).
    row_ids = i * tq + lax.broadcasted_iota(jnp.int32, (tq, 1), 0)
    col_ids = k * tk + lax.broadcasted_iota(jnp.int32, (1, tk), 1)
    col_valid = col_ids < n_valid                      # (1, tk): real columns
    diff = row_ids - col_ids                           # (tq, tk)
    logits_mask = jnp.logical_and(col_valid, diff != 0)  # denominator mask

    # Positives: same sample, different view.  Row index = view*bsz + sample, so
    # same-sample <=> diff == +-v*bsz for v = 1..n_views-1 (unrolled at trace time,
    # avoids vector integer mod and any sample-id side inputs).
    pos = jnp.logical_or(diff == bsz, diff == -bsz)
    for v in range(2, n_views):
        pos = jnp.logical_or(pos, diff == v * bsz)
        pos = jnp.logical_or(pos, diff == -v * bsz)
    pos_mask = jnp.logical_and(pos, col_valid)

    # Online log-sum-exp over non-self real columns.  The running max is taken
    # over all real columns (diagonal included), matching torch's logits_max and
    # keeping every exp argument of a real column <= 0.
    m_prev = m_sc[...]
    tile_max = jnp.max(jnp.where(col_valid, sim, _NEG_BIG), axis=1, keepdims=True)
    m_new = jnp.maximum(m_prev, tile_max)
    alpha = jnp.exp(m_prev - m_new)
    p = jnp.where(logits_mask, jnp.exp(sim - m_new), 0.0)
    l_sc[...] = alpha * l_sc[...] + jnp.sum(p, axis=1, keepdims=True)
    s_sc[...] = s_sc[...] + jnp.sum(jnp.where(pos_mask, sim, 0.0),
                                    axis=1, keepdims=True)
    m_sc[...] = m_new

    @pl.when(k == pl.num_programs(1) - 1)
    def _finalize():
        # sum_j pos*log_prob = sum_j pos*sim - P * log(sum_j exp(sim)*logits_mask);
        # the stability shift cancels.  P = n_views - 1 (constant, labels=None).
        row_valid = row_ids < n_valid                  # (tq, 1)
        lse = m_sc[...] + jnp.log(l_sc[...])
        per_row = s_sc[...] - n_pos * lse
        out_ref[...] = jnp.where(row_valid, out_scale * per_row, 0.0)


def supcon_loss(features, temperature=0.07, contrast_mode='all',
                base_temperature=0.07, labels=None, mask=None,
                block_q=512, block_k=256, compute_dtype=jnp.bfloat16,
                in_vmem_budget_bytes=16 * 1024 * 1024):
    """SupConLoss forward (labels=None, mask=None -> SimCLR / eye-mask case)."""
    if features.ndim < 3:
        raise ValueError('`features` needs to be [bsz, n_views, ...]')
    if features.ndim > 3:
        features = features.reshape(features.shape[0], features.shape[1], -1)
    if contrast_mode != 'all':
        raise NotImplementedError('only contrast_mode="all" implemented')
    if labels is not None or mask is not None:
        raise NotImplementedError('labels=/mask= supervised variants not implemented')

    bsz, n_views, dim = features.shape
    if n_views < 2:
        raise ValueError('SupConLoss needs n_views >= 2 (no positive pairs otherwise)')
    if block_k % 128 != 0 or block_q % 128 != 0 or block_q < block_k:
        raise ValueError('block_q/block_k must be multiples of 128 with block_q >= block_k')

    n = bsz * n_views

    # contrast_feature = cat(unbind(features, 1), 0) -> row index = view*bsz + sample.
    a = jnp.transpose(features, (1, 0, 2)).reshape(n, dim)
    if a.dtype != compute_dtype:
        a = a.astype(compute_dtype)   # bf16 operands: MXU fast path, half the DMA

    d_pad = _round_up(dim, 128)
    itemsize = jnp.dtype(compute_dtype).itemsize
    tq, tk, n_pad = _choose_tiles(n, d_pad, block_q, block_k, itemsize,
                                  in_vmem_budget_bytes)
    a_pad = jnp.pad(a, ((0, n_pad - n), (0, d_pad - dim)))

    n_pos = n_views - 1
    out_scale = -(float(temperature) / float(base_temperature)) / (n_pos * n)

    kernel = functools.partial(
        _supcon_kernel,
        n_valid=n,
        bsz=int(bsz),
        n_views=int(n_views),
        n_pos=float(n_pos),
        inv_temp=1.0 / float(temperature),
        out_scale=float(out_scale))

    # Explicit scoped-VMEM limit: double-buffered inputs + (tq,tk) f32 intermediates
    # + tiny row stats, with headroom; capped so it stays inside v7x's 64 MiB.
    est_bytes = (2 * (tq + tk) * d_pad * itemsize   # double-buffered feature tiles
                 + 4 * tq * tk * 4                  # sim / p / mask intermediates
                 + 10 * tq * 4)                     # row stats + output
    vmem_limit = int(min(48 * 1024 * 1024, max(32 * 1024 * 1024, 2 * est_bytes)))

    grid = (n_pad // tq, n_pad // tk)
    partial_rows = pl.pallas_call(
        kernel,
        out_shape=jax.ShapeDtypeStruct((n_pad, 1), jnp.float32),
        grid_spec=pltpu.PrefetchScalarGridSpec(
            num_scalar_prefetch=0,
            grid=grid,
            in_specs=[
                pl.BlockSpec((tq, d_pad), lambda i, k: (i, 0)),  # anchor rows (resident)
                pl.BlockSpec((tk, d_pad), lambda i, k: (k, 0)),  # contrast cols (streamed)
            ],
            out_specs=pl.BlockSpec((tq, 1), lambda i, k: (i, 0)),
            scratch_shapes=[
                pltpu.VMEM((tq, 1), jnp.float32),   # running row max
                pltpu.VMEM((tq, 1), jnp.float32),   # running denominator
                pltpu.VMEM((tq, 1), jnp.float32),   # running sum pos*sim
            ],
        ),
        compiler_params=pltpu.CompilerParams(
            dimension_semantics=("parallel", "arbitrary"),
            vmem_limit_bytes=vmem_limit),
    )(a_pad, a_pad)

    # Per-row partials (already scaled); padded rows are 0.  Final reduce on host.
    return jnp.sum(partial_rows)


def _supcon_loss_ref(features, temperature=0.07, base_temperature=0.07):
    """Pure-JAX reference mirroring the PyTorch forward (for verification)."""
    bsz, n_views, dim = features.shape
    n = bsz * n_views
    a = jnp.transpose(features, (1, 0, 2)).reshape(n, dim).astype(jnp.float32)
    sim = jnp.matmul(a, a.T) / temperature
    logits = sim - jnp.max(sim, axis=1, keepdims=True)
    logits_mask = 1.0 - jnp.eye(n, dtype=jnp.float32)
    mask = jnp.tile(jnp.eye(bsz, dtype=jnp.float32), (n_views, n_views)) * logits_mask
    exp_logits = jnp.exp(logits) * logits_mask
    log_prob = logits - jnp.log(exp_logits.sum(1, keepdims=True))
    mean_log_prob_pos = (mask * log_prob).sum(1) / mask.sum(1)
    loss = -(temperature / base_temperature) * mean_log_prob_pos
    return loss.mean()


if __name__ == "__main__":
    key = jax.random.PRNGKey(0)
    k1, k2, k3 = jax.random.split(key, 3)

    def _run_and_check(feats, **kw):
        out = jax.block_until_ready(supcon_loss(feats, **kw))
        # Tight check against the reference evaluated on bf16-rounded features
        # (isolates the intentional operand cast from any kernel math error).
        ref_bf16 = _supcon_loss_ref(feats.astype(jnp.bfloat16).astype(jnp.float32))
        # Looser check against the full-precision reference (bf16 operand drift).
        ref_f32 = _supcon_loss_ref(feats)
        assert bool(jnp.isfinite(out)), out
        assert jnp.allclose(out, ref_bf16, atol=3e-3, rtol=3e-3), (out, ref_bf16)
        assert jnp.allclose(out, ref_f32, atol=5e-2, rtol=5e-2), (out, ref_f32)
        return out

    # Small case (single tile).
    bsz, n_views, dim = 8, 2, 32
    feats = jax.random.normal(k1, (bsz, n_views, dim), dtype=jnp.float32)
    feats = feats / jnp.linalg.norm(feats, axis=-1, keepdims=True)
    _run_and_check(feats)

    # Larger case exercising the 2-D grid, online LSE, padded columns and the
    # asymmetric-tile / megacore selection path.
    bsz2, n_views2, dim2 = 96, 2, 48
    feats2 = jax.random.normal(k2, (bsz2, n_views2, dim2), dtype=jnp.float32)
    feats2 = feats2 / jnp.linalg.norm(feats2, axis=-1, keepdims=True)
    _run_and_check(feats2, block_q=256, block_k=128)

    # n_views = 3 exercises the multi-offset in-kernel positive mask.
    bsz3, n_views3, dim3 = 10, 3, 20
    feats3 = jax.random.normal(k3, (bsz3, n_views3, dim3), dtype=jnp.float32)
    feats3 = feats3 / jnp.linalg.norm(feats3, axis=-1, keepdims=True)
    _run_and_check(feats3)

    print("KERNEL_OK")
</pallas_src>

<mosaic_0001>
module attributes {stable_mosaic.version = 11 : i64} {
  func.func @_supcon_kernel(%arg0: i32, %arg1: i32, %arg2: memref<16x128xbf16, #tpu.memory_space<vmem>>, %arg3: memref<16x128xbf16, #tpu.memory_space<vmem>>, %arg4: memref<16x1xf32, #tpu.memory_space<vmem>>, %arg5: memref<16x1xf32, #tpu.memory_space<vmem>>, %arg6: memref<16x1xf32, #tpu.memory_space<vmem>>, %arg7: memref<16x1xf32, #tpu.memory_space<vmem>>) attributes {dimension_semantics = [#tpu.dimension_semantics<parallel>, #tpu.dimension_semantics<arbitrary>], iteration_bounds = array<i64: 1, 1>, scalar_prefetch = 0 : i64, scratch_operands = 3 : i64, tpu.core_type = #tpu.core_type<tc>, window_params = [{transform_indices = @transform_0, window_bounds = array<i64: 16, 128>}, {transform_indices = @transform_1, window_bounds = array<i64: 16, 128>}, {transform_indices = @transform_2, window_bounds = array<i64: 16, 1>}]} {
    %c0_i32 = arith.constant 0 : i32
    %0 = arith.cmpi eq, %arg1, %c0_i32 : i32
    %1 = arith.extui %0 : i1 to i32
    %c0_i32_0 = arith.constant 0 : i32
    %2 = arith.cmpi ne, %1, %c0_i32_0 : i32
    scf.if %2 {
      %cst_28 = arith.constant -1.000000e+30 : f32
      %64 = vector.broadcast %cst_28 : f32 to vector<16x1xf32>
      %c0_29 = arith.constant 0 : index
      %c0_30 = arith.constant 0 : index
      %65 = vector.load %arg5[%c0_29, %c0_30] : memref<16x1xf32, #tpu.memory_space<vmem>>, vector<16x1xf32>
      tpu.vector_store %arg5[%c0_29, %c0_30], %64 {strides = array<i32>} : memref<16x1xf32, #tpu.memory_space<vmem>>, vector<16x1xf32>,
      %cst_31 = arith.constant 0.000000e+00 : f32
      %66 = vector.broadcast %cst_31 : f32 to vector<16x1xf32>
      %c0_32 = arith.constant 0 : index
      %c0_33 = arith.constant 0 : index
      %67 = vector.load %arg6[%c0_32, %c0_33] : memref<16x1xf32, #tpu.memory_space<vmem>>, vector<16x1xf32>
      tpu.vector_store %arg6[%c0_32, %c0_33], %66 {strides = array<i32>} : memref<16x1xf32, #tpu.memory_space<vmem>>, vector<16x1xf32>,
      %cst_34 = arith.constant 0.000000e+00 : f32
      %68 = vector.broadcast %cst_34 : f32 to vector<16x1xf32>
      %c0_35 = arith.constant 0 : index
      %c0_36 = arith.constant 0 : index
      %69 = vector.load %arg7[%c0_35, %c0_36] : memref<16x1xf32, #tpu.memory_space<vmem>>, vector<16x1xf32>
      tpu.vector_store %arg7[%c0_35, %c0_36], %68 {strides = array<i32>} : memref<16x1xf32, #tpu.memory_space<vmem>>, vector<16x1xf32>,
    } else {
    }
    %c0 = arith.constant 0 : index
    %c0_1 = arith.constant 0 : index
    %3 = vector.load %arg2[%c0, %c0_1] : memref<16x128xbf16, #tpu.memory_space<vmem>>, vector<16x128xbf16>
    %c0_2 = arith.constant 0 : index
    %c0_3 = arith.constant 0 : index
    %4 = vector.load %arg3[%c0_2, %c0_3] : memref<16x128xbf16, #tpu.memory_space<vmem>>, vector<16x128xbf16>
    %cst = arith.constant dense<0.000000e+00> : vector<16x16xf32>
    %5 = tpu.matmul %3, %4, %cst {dimension_numbers = #tpu.dot_dimension_numbers<[1], [1], [0], [0], [0, 0, 1, 0], [], []>} : vector<16x128xbf16>, vector<16x128xbf16>, vector<16x16xf32> -> vector<16x16xf32>
    %cst_4 = arith.constant 14.2857141 : f32
    %6 = vector.broadcast %cst_4 : f32 to vector<16x16xf32>
    %7 = arith.mulf %5, %6 : vector<16x16xf32>
    %c16_i32 = arith.constant 16 : i32
    %8 = arith.muli %arg0, %c16_i32 : i32
    %9 = tpu.iota {dimensions = array<i32: 0>} : vector<16x1xi32>
    %10 = vector.broadcast %8 : i32 to vector<16x1xi32>
    %11 = arith.addi %10, %9 : vector<16x1xi32>
    %c16_i32_5 = arith.constant 16 : i32
    %12 = arith.muli %arg1, %c16_i32_5 : i32
    %13 = tpu.iota {dimensions = array<i32: 1>} : vector<1x16xi32>
    %14 = vector.broadcast %12 : i32 to vector<1x16xi32>
    %15 = arith.addi %14, %13 : vector<1x16xi32>
    %c16_i32_6 = arith.constant 16 : i32
    %16 = vector.broadcast %c16_i32_6 : i32 to vector<1x16xi32>
    %17 = arith.cmpi slt, %15, %16 : vector<1x16xi32>
    %18 = vector.broadcast %11 : vector<16x1xi32> to vector<16x16xi32>
    %19 = vector.broadcast %15 : vector<1x16xi32> to vector<16x16xi32>
    %20 = arith.subi %18, %19 : vector<16x16xi32>
    %c0_i32_7 = arith.constant 0 : i32
    %21 = vector.broadcast %c0_i32_7 : i32 to vector<16x16xi32>
    %22 = arith.cmpi ne, %20, %21 : vector<16x16xi32>
    %23 = vector.broadcast %17 : vector<1x16xi1> to vector<16x16xi1>
    %24 = arith.andi %23, %22 : vector<16x16xi1>
    %c8_i32 = arith.constant 8 : i32
    %25 = vector.broadcast %c8_i32 : i32 to vector<16x16xi32>
    %26 = arith.cmpi eq, %20, %25 : vector<16x16xi32>
    %c-8_i32 = arith.constant -8 : i32
    %27 = vector.broadcast %c-8_i32 : i32 to vector<16x16xi32>
    %28 = arith.cmpi eq, %20, %27 : vector<16x16xi32>
    %29 = arith.ori %26, %28 : vector<16x16xi1>
    %30 = vector.broadcast %17 : vector<1x16xi1> to vector<16x16xi1>
    %31 = arith.andi %29, %30 : vector<16x16xi1>
    %c0_8 = arith.constant 0 : index
    %c0_9 = arith.constant 0 : index
    %32 = vector.load %arg5[%c0_8, %c0_9] : memref<16x1xf32, #tpu.memory_space<vmem>>, vector<16x1xf32>
    %cst_10 = arith.constant -1.000000e+30 : f32
    %33 = vector.shape_cast %17 : vector<1x16xi1> to vector<1x16xi1>
    %34 = vector.broadcast %33 : vector<1x16xi1> to vector<16x16xi1>
    %35 = vector.broadcast %cst_10 : f32 to vector<16x16xf32>
    %36 = arith.select %34, %7, %35 : vector<16x16xi1>, vector<16x16xf32>
    %cst_11 = arith.constant dense<0xFF800000> : vector<16xf32>
    %37 = vector.multi_reduction <maximumf>, %36, %cst_11 [1] : vector<16x16xf32> to vector<16xf32>
    %38 = vector.shape_cast %37 : vector<16xf32> to vector<16x1xf32>
    %39 = arith.maximumf %32, %38 : vector<16x1xf32>
    %40 = arith.subf %32, %39 : vector<16x1xf32>
    %41 = math.exp %40 : vector<16x1xf32>
    %42 = vector.broadcast %39 : vector<16x1xf32> to vector<16x16xf32>
    %43 = arith.subf %7, %42 : vector<16x16xf32>
    %44 = math.exp %43 : vector<16x16xf32>
    %cst_12 = arith.constant 0.000000e+00 : f32
    %45 = vector.broadcast %cst_12 : f32 to vector<16x16xf32>
    %46 = arith.select %24, %44, %45 : vector<16x16xi1>, vector<16x16xf32>
    %c0_13 = arith.constant 0 : index
    %c0_14 = arith.constant 0 : index
    %47 = vector.load %arg6[%c0_13, %c0_14] : memref<16x1xf32, #tpu.memory_space<vmem>>, vector<16x1xf32>
    %48 = arith.mulf %41, %47 : vector<16x1xf32>
    %cst_15 = arith.constant dense<0.000000e+00> : vector<16xf32>
    %49 = vector.multi_reduction <add>, %46, %cst_15 [1] : vector<16x16xf32> to vector<16xf32>
    %50 = vector.shape_cast %49 : vector<16xf32> to vector<16x1xf32>
    %51 = arith.addf %48, %50 : vector<16x1xf32>
    %c0_16 = arith.constant 0 : index
    %c0_17 = arith.constant 0 : index
    %52 = vector.load %arg6[%c0_16, %c0_17] : memref<16x1xf32, #tpu.memory_space<vmem>>, vector<16x1xf32>
    tpu.vector_store %arg6[%c0_16, %c0_17], %51 {strides = array<i32>} : memref<16x1xf32, #tpu.memory_space<vmem>>, vector<16x1xf32>,
    %c0_18 = arith.constant 0 : index
    %c0_19 = arith.constant 0 : index
    %53 = vector.load %arg7[%c0_18, %c0_19] : memref<16x1xf32, #tpu.memory_space<vmem>>, vector<16x1xf32>
    %cst_20 = arith.constant 0.000000e+00 : f32
    %54 = vector.broadcast %cst_20 : f32 to vector<16x16xf32>
    %55 = arith.select %31, %7, %54 : vector<16x16xi1>, vector<16x16xf32>
    %cst_21 = arith.constant dense<0.000000e+00> : vector<16xf32>
    %56 = vector.multi_reduction <add>, %55, %cst_21 [1] : vector<16x16xf32> to vector<16xf32>
    %57 = vector.shape_cast %56 : vector<16xf32> to vector<16x1xf32>
    %58 = arith.addf %53, %57 : vector<16x1xf32>
    %c0_22 = arith.constant 0 : index
    %c0_23 = arith.constant 0 : index
    %59 = vector.load %arg7[%c0_22, %c0_23] : memref<16x1xf32, #tpu.memory_space<vmem>>, vector<16x1xf32>
    tpu.vector_store %arg7[%c0_22, %c0_23], %58 {strides = array<i32>} : memref<16x1xf32, #tpu.memory_space<vmem>>, vector<16x1xf32>,
    %c0_24 = arith.constant 0 : index
    %c0_25 = arith.constant 0 : index
    %60 = vector.load %arg5[%c0_24, %c0_25] : memref<16x1xf32, #tpu.memory_space<vmem>>, vector<16x1xf32>
    tpu.vector_store %arg5[%c0_24, %c0_25], %39 {strides = array<i32>} : memref<16x1xf32, #tpu.memory_space<vmem>>, vector<16x1xf32>,
    %c0_i32_26 = arith.constant 0 : i32
    %61 = arith.cmpi eq, %arg1, %c0_i32_26 : i32
    %62 = arith.extui %61 : i1 to i32
    %c0_i32_27 = arith.constant 0 : i32
    %63 = arith.cmpi ne, %62, %c0_i32_27 : i32
    scf.if %63 {
      %c16_i32_28 = arith.constant 16 : i32
      %64 = vector.broadcast %c16_i32_28 : i32 to vector<16x1xi32>
      %65 = arith.cmpi slt, %11, %64 : vector<16x1xi32>
      %c0_29 = arith.constant 0 : index
      %c0_30 = arith.constant 0 : index
      %66 = vector.load %arg5[%c0_29, %c0_30] : memref<16x1xf32, #tpu.memory_space<vmem>>, vector<16x1xf32>
      %c0_31 = arith.constant 0 : index
      %c0_32 = arith.constant 0 : index
      %67 = vector.load %arg6[%c0_31, %c0_32] : memref<16x1xf32, #tpu.memory_space<vmem>>, vector<16x1xf32>
      %68 = math.log %67 : vector<16x1xf32>
      %69 = arith.addf %66, %68 : vector<16x1xf32>
      %c0_33 = arith.constant 0 : index
      %c0_34 = arith.constant 0 : index
      %70 = vector.load %arg7[%c0_33, %c0_34] : memref<16x1xf32, #tpu.memory_space<vmem>>, vector<16x1xf32>
      %cst_35 = arith.constant 1.000000e+00 : f32
      %71 = vector.broadcast %cst_35 : f32 to vector<16x1xf32>
      %72 = arith.mulf %71, %69 : vector<16x1xf32>
      %73 = arith.subf %70, %72 : vector<16x1xf32>
      %cst_36 = arith.constant -6.250000e-02 : f32
      %74 = vector.broadcast %cst_36 : f32 to vector<16x1xf32>
      %75 = arith.mulf %74, %73 : vector<16x1xf32>
      %cst_37 = arith.constant 0.000000e+00 : f32
      %76 = vector.broadcast %cst_37 : f32 to vector<16x1xf32>
      %77 = arith.select %65, %75, %76 : vector<16x1xi1>, vector<16x1xf32>
      %c0_38 = arith.constant 0 : index
      %c0_39 = arith.constant 0 : index
      %78 = vector.load %arg4[%c0_38, %c0_39] : memref<16x1xf32, #tpu.memory_space<vmem>>, vector<16x1xf32>
      tpu.vector_store %arg4[%c0_38, %c0_39], %77 {strides = array<i32>} : memref<16x1xf32, #tpu.memory_space<vmem>>, vector<16x1xf32>,
    } else {
    }
    return
  }
  func.func @transform_0(%arg0: i32, %arg1: i32) -> (i32, i32) {
    %c0_i32 = arith.constant 0 : i32
    %c0_i32_0 = arith.constant 0 : i32
    return %arg0, %c0_i32 : i32, i32
  }
  func.func @transform_1(%arg0: i32, %arg1: i32) -> (i32, i32) {
    %c0_i32 = arith.constant 0 : i32
    %c0_i32_0 = arith.constant 0 : i32
    return %arg1, %c0_i32 : i32, i32
  }
  func.func @transform_2(%arg0: i32, %arg1: i32) -> (i32, i32) {
    %c0_i32 = arith.constant 0 : i32
    %c0_i32_0 = arith.constant 0 : i32
    return %arg0, %c0_i32 : i32, i32
  }
}

</mosaic_0001>

<llo_original>
// kernel: tpu_custom_call.1
$region0: #{tpu_custom_call.1}
  #allocation0 [shape = 'u32[]', space=smem, size = 0x4, offset = 0x4, fixed_abs, tag = 'smem constant byte address 0x4 - core index']
  #allocation1 [shape = 'u32[144,128]{1,0:T(1,128)}', space=vmem, size = 0x12000, scoped, tag = 'internal scratch']
  #allocation2 [shape = 'f32[16,1]{1,0:T(8,128)}', space=vmem, size = 0x2000, scoped, tag = 'scratch operand']
  #allocation3 [shape = 'f32[16,1]{1,0:T(8,128)}', space=vmem, size = 0x2000, scoped, tag = 'scratch operand']
  #allocation4 [shape = 'f32[16,1]{1,0:T(8,128)}', space=vmem, size = 0x2000, scoped, tag = 'scratch operand']
  %s0 = inlined_call_operand.hbm [shape: bf16[16,128], index: 0, kind: input, shape index: {}]
  %s1 = inlined_call_operand.hbm [shape: bf16[16,128], index: 1, kind: input, shape index: {}]
  %s2 = inlined_call_operand.vmem [shape: f32[16,1], index: 2, kind: output, shape index: {}]
  %s3 = sld [smem:[#allocation0]]
  $region34: #{tpu_custom_call.1} parent=0
    _
  %s5 = ssub.s32 1, %s3
  %s6 = scalar_select 0, %s5, %s3
  $region1: #{tpu_custom_call.1} parent=0
    #allocation5 [shape = 'u8[4096]{0}', space=vmem, size = 0x1000, scoped, tag = 'input window, operand 0, single buffered']
    #allocation6 [shape = 's32[1]{0}', space=sflag, size = 0x4, scoped, tag = 'scoped memory for tpu_custom_call.1']
    #allocation7 [shape = 'u8[4096]{0}', space=vmem, size = 0x1000, scoped, tag = 'input window, operand 1, single buffered']
    #allocation8 [shape = 's32[1]{0}', space=sflag, size = 0x4, scoped, tag = 'scoped memory for tpu_custom_call.1']
    %7 = vsyncpa [#allocation6], 0
    %8 = vsyncpa [#allocation8], 0
    // Predicated region
    $region2: #{tpu_custom_call.1} parent=1 // pred_check
      _
    $region3: #{tpu_custom_call.1} parent=1 // pred_check_branch
      %10 = sbr.rel (0) target = $region5
    $region4: #{tpu_custom_call.1} parent=1 // pred_region
      %s12 = ssub.s32 128, 128
      %13 = vsyncadd [#allocation6], %s12
      %s14 = sshll.u32 [#allocation5], 4
      %s15 = int_to_ptr.vmem [resolvable:$true] %s14
      %20 = dma.hbm_to_vmem [thread:$0]  %s0, 128, %s15, [#allocation6], 64, 64, 4
    $region5: #{tpu_custom_call.1} parent=1 // pred_fallthru
      _
    // Predicated region
    $region6: #{tpu_custom_call.1} parent=1 // pred_check
      _
    $region7: #{tpu_custom_call.1} parent=1 // pred_check_branch
      %22 = sbr.rel (0) target = $region9
    $region8: #{tpu_custom_call.1} parent=1 // pred_region
      %s24 = ssub.s32 128, 128
      %25 = vsyncadd [#allocation8], %s24
      %s26 = sshll.u32 [#allocation7], 4
      %s27 = int_to_ptr.vmem [resolvable:$true] %s26
      %32 = dma.hbm_to_vmem [thread:$0]  %s1, 128, %s27, [#allocation8], 64, 64, 4
    $region9: #{tpu_custom_call.1} parent=1 // pred_fallthru
      _
    // Predicated region
    $region10: #{tpu_custom_call.1} parent=1 // pred_check
      _
    $region11: #{tpu_custom_call.1} parent=1 // pred_check_branch
      %34 = sbr.rel (0) target = $region13
    $region12: #{tpu_custom_call.1} parent=1 // pred_region
      %35 = dma.done [#allocation6], 128
    $region13: #{tpu_custom_call.1} parent=1 // pred_fallthru
      _
    // Predicated region
    $region14: #{tpu_custom_call.1} parent=1 // pred_check
      _
    $region15: #{tpu_custom_call.1} parent=1 // pred_check_branch
      %37 = sbr.rel (0) target = $region17
    $region16: #{tpu_custom_call.1} parent=1 // pred_region
      %38 = dma.done [#allocation8], 128
    $region17: #{tpu_custom_call.1} parent=1 // pred_fallthru
      _
    %p40 = scmp.eq.s32.totalorder 0, 0
    // Predicated region
    $region18: #{tpu_custom_call.1} parent=1 // pred_check
      %p41 = pneg %p40
    $region19: #{tpu_custom_call.1} parent=1 // pred_check_branch
      %43 = sbr.rel (%p41) target = $region21
    $region20: #{tpu_custom_call.1} parent=1 // pred_region
      %vm44 = vcmask 7168
      %45 = vst.msk [vmem:[#allocation2] sm:$0xff] %vm44, -1e+30
      %46 = vst.msk [vmem:[#allocation2 + $0x8] sm:$0xff] %vm44, -1e+30
      %47 = vst.msk [vmem:[#allocation3] sm:$0xff] %vm44, 0.0
      %48 = vst.msk [vmem:[#allocation3 + $0x8] sm:$0xff] %vm44, 0.0
      %49 = vst.msk [vmem:[#allocation4] sm:$0xff] %vm44, 0.0
      %50 = vst.msk [vmem:[#allocation4 + $0x8] sm:$0xff] %vm44, 0.0
    $region21: #{tpu_custom_call.1} parent=1 // pred_fallthru
      _
    %v51 = vld [vmem:[#allocation5] sm:$0xf]
    %v52 = vld [vmem:[#allocation5 + $0x4] sm:$0xf]
    %v53 = vld [vmem:[#allocation7] sm:$0xf]
    %v54 = vld [vmem:[#allocation7 + $0x4] sm:$0xf]
    %v57 = vunpack.c.l.b16 %v51
    %v58 = vunpack.c.l.b16 %v52
    %v59 = vpack.c.b16 %v58, %v57
    %v63 = vunpack.c.l.b16 %v53
    %v64 = vunpack.c.l.b16 %v54
    %v65 = vpack.c.b16 %v64, %v63
    %67 = vmatprep.subr.bf16.mxu0 0
    %68 = vmatpush1.bf16.xpose.msra.mxu0 %v65
    %69 = vmatprep.subr.bf16.mxu0 0
    %70 = vmatpush1.bf16.xpose.msra.mxu0 0
    %71 = vmatprep.subr.bf16.mxu0 0
    %72 = vmatpush1.bf16.xpose.msra.mxu0 0
    %73 = vmatprep.subr.bf16.mxu0 0
    %74 = vmatpush1.bf16.xpose.msra.mxu0 0
    %75 = vmatprep.subr.bf16.mxu0 0
    %76 = vmatpush1.bf16.xpose.msra.mxu0 0
    %77 = vmatprep.subr.bf16.mxu0 0
    %78 = vmatpush1.bf16.xpose.msra.mxu0 0
    %79 = vmatprep.subr.bf16.mxu0 0
    %80 = vmatpush1.bf16.xpose.msra.mxu0 0
    %81 = vmatprep.subr.bf16.mxu0 0
    %82 = vmatpush1.bf16.xpose.msra.mxu0 0
    %83 = vmatprep.subr.bf16.mxu0 0
    %84 = vmatpush1.bf16.xpose.msra.mxu0 0
    %85 = vmatprep.subr.bf16.mxu0 0
    %86 = vmatpush1.bf16.xpose.msra.mxu0 0
    %87 = vmatprep.subr.bf16.mxu0 0
    %88 = vmatpush1.bf16.xpose.msra.mxu0 0
    %89 = vmatprep.subr.bf16.mxu0 0
    %90 = vmatpush1.bf16.xpose.msra.mxu0 0
    %91 = vmatprep.subr.bf16.mxu0 0
    %92 = vmatpush1.bf16.xpose.msra.mxu0 0
    %93 = vmatprep.subr.bf16.mxu0 0
    %94 = vmatpush1.bf16.xpose.msra.mxu0 0
    %95 = vmatprep.subr.bf16.mxu0 0
    %96 = vmatpush1.bf16.xpose.msra.mxu0 0
    %97 = vmatprep.subr.bf16.mxu0 0
    %98 = vmatpush1.bf16.xpose.msra.mxu0 0
    %99 = vmatprep.mubr.bf16.mxu0 0
    %100 = vmatmul.mubr.bf16.gmra.mrb[0].mxu0 %v59
    %v101 = vpop.f32.mrb[0].mxu0
    %v102 = vadd.f32 0.0, %v101
    %v103 = vpop.f32.mrb[0].mxu0
    %v104 = vpop.f32.mrb[0].mxu0
    %v105 = vadd.f32 0.0, %v104
    %v106 = vpop.f32.mrb[0].mxu0
    %107 = vdwg.mxu0
    %v108 = vmul.f32 %v102, 14.285714
    %v109 = vmul.f32 %v105, 14.285714
    %s110 = smul.u32 0, 16
    %v111 = vlaneseq
    %v112 = vshrl.u32 %v111, 7
    %v113 = vadd.s32 %v112, 8
    %v114 = vstv %s110
    %v115 = vadd.s32 %v114, %v112
    %v116 = vadd.s32 %v114, %v113
    %s117 = smul.u32 0, 16
    %v118 = vlaneseq
    %v119 = vand.u32 %v118, 127
    %v120 = vstv %s117
    %v121 = vadd.s32 %v120, %v119
    %vm122 = vcmp.lt.s32.totalorder %v121, 16
    %v123 = vsub.s32 %v115, %v121
    %v124 = vsub.s32 %v116, %v121
    %vm125 = vcmp.ne.s32.totalorder %v123, 0
    %vm126 = vcmp.ne.s32.totalorder %v124, 0
    %v127 = vsel %vm122, 1, 0
    %vm128 = vcmp.eq.s32.totalorder %v127, 1
    %vm129 = vmand %vm128, %vm125
    %vm130 = vmand %vm128, %vm126
    %vm131 = vcmp.eq.s32.totalorder %v123, 8
    %vm132 = vcmp.eq.s32.totalorder %v124, 8
    %vm133 = vcmp.eq.s32.totalorder %v123, 4294967288
    %vm134 = vcmp.eq.s32.totalorder %v124, 4294967288
    %vm135 = vmor %vm131, %vm133
    %vm136 = vmor %vm132, %vm134
    %vm137 = vmand %vm135, %vm128
    %vm138 = vmand %vm136, %vm128
    %v139 = vld [vmem:[#allocation2] sm:$0xff]
    %v140 = vld [vmem:[#allocation2 + $0x8] sm:$0xff]
    %v141 = vsel %vm128, %v108, -1e+30
    %v142 = vsel %vm128, %v109, -1e+30
    %vm143 = vcmask 130048
    %v144 = vsel %vm143, %v141, -inf
    %145 = vmax.xlane.f32.xlu0 %v144
    %v146 = vpop.xlane.xlu0 %145
    %v147 = vsel %vm143, %v142, -inf
    %148 = vmax.xlane.f32.xlu0 %v147
    %v149 = vpop.xlane.xlu0 %148
    %v150 = vmax.f32 %v139, %v146
    %v151 = vmax.f32 %v140, %v149
    %v152 = vsub.f32 %v139, %v150
    %v153 = vsub.f32 %v140, %v151
    %v154 = vmul.f32 %v152, 1.442695
    %v155 = vpow.pop %v154
    %v156 = vmul.f32 %v153, 1.442695
    %v157 = vpow.pop %v156
    %159 = vset.pattern.permute.xlu0 0
    %160 = vperm.xlu0 %159, %v150
    %v161 = vpop.permute.xlu0 %160
    %164 = vset.pattern.permute.xlu0 0
    %165 = vperm.xlu0 %164, %v151
    %v166 = vpop.permute.xlu0 %165
    %v168 = vsub.f32 %v108, %v161
    %v169 = vsub.f32 %v109, %v166
    %v170 = vmul.f32 %v168, 1.442695
    %v171 = vpow.pop %v170
    %v172 = vmul.f32 %v169, 1.442695
    %v173 = vpow.pop %v172
    %v174 = vsel %vm129, %v171, 0.0
    %v175 = vsel %vm130, %v173, 0.0
    %v176 = vld [vmem:[#allocation3] sm:$0xff]
    %v177 = vld [vmem:[#allocation3 + $0x8] sm:$0xff]
    %v178 = vmul.f32 %v155, %v176
    %v179 = vmul.f32 %v157, %v177
    %v180 = vsel %vm143, %v174, 0.0
    %181 = vadd.xlane.f32.xlu0 %v180
    %v182 = vpop.xlane.xlu0 %181
    %v183 = vsel %vm143, %v175, 0.0
    %184 = vadd.xlane.f32.xlu0 %v183
    %v185 = vpop.xlane.xlu0 %184
    %v186 = vadd.f32 %v178, %v182
    %v187 = vadd.f32 %v179, %v185
    %vm188 = vcmask 7168
    %189 = vst.msk [vmem:[#allocation3] sm:$0xff] %vm188, %v186
    %190 = vst.msk [vmem:[#allocation3 + $0x8] sm:$0xff] %vm188, %v187
    %v191 = vld [vmem:[#allocation4] sm:$0xff]
    %v192 = vld [vmem:[#allocation4 + $0x8] sm:$0xff]
    %v193 = vsel %vm137, %v108, 0.0
    %v194 = vsel %vm138, %v109, 0.0
    %v195 = vsel %vm143, %v193, 0.0
    %196 = vadd.xlane.f32.xlu0 %v195
    %v197 = vpop.xlane.xlu0 %196
    %v198 = vsel %vm143, %v194, 0.0
    %199 = vadd.xlane.f32.xlu0 %v198
    %v200 = vpop.xlane.xlu0 %199
    %v201 = vadd.f32 %v191, %v197
    %v202 = vadd.f32 %v192, %v200
    %203 = vst.msk [vmem:[#allocation4] sm:$0xff] %vm188, %v201
    %204 = vst.msk [vmem:[#allocation4 + $0x8] sm:$0xff] %vm188, %v202
    %205 = vst.msk [vmem:[#allocation2] sm:$0xff] %vm188, %v150
    %206 = vst.msk [vmem:[#allocation2 + $0x8] sm:$0xff] %vm188, %v151
    // Predicated region
    $region22: #{tpu_custom_call.1} parent=1 // pred_check
      %p207 = pneg %p40
    $region23: #{tpu_custom_call.1} parent=1 // pred_check_branch
      %209 = sbr.rel (%p207) target = $region25
    $region24: #{tpu_custom_call.1} parent=1 // pred_region
      %vm210 = vcmp.lt.s32.totalorder %v115, 16
      %vm211 = vcmp.lt.s32.totalorder %v116, 16
      %v212 = vld [vmem:[#allocation2] sm:$0xff]
      %v213 = vld [vmem:[#allocation2 + $0x8] sm:$0xff]
      %v214 = vld [vmem:[#allocation3] sm:$0xff]
      %v215 = vld [vmem:[#allocation3 + $0x8] sm:$0xff]
      %v216 = vlog2.pop %v214
      %v217 = vmul.f32 %v216, 0.6931472
      %v218 = vlog2.pop %v215
      %v219 = vmul.f32 %v218, 0.6931472
      %v220 = vadd.f32 %v212, %v217
      %v221 = vadd.f32 %v213, %v219
      %v222 = vld [vmem:[#allocation4] sm:$0xff]
      %v223 = vld [vmem:[#allocation4 + $0x8] sm:$0xff]
      %v224 = vsub.f32 %v222, %v220
      %v225 = vsub.f32 %v223, %v221
      %v226 = vmul.f32 %v224, -0.0625
      %v227 = vmul.f32 %v225, -0.0625
      %v228 = vsel %vm210, %v226, 0.0
      %v229 = vsel %vm211, %v227, 0.0
      %230 = vst.msk [vmem:[%s2] sm:$0xff] %vm188, %v228
      %231 = vst.msk [vmem:[%s2 + $0x8] sm:$0xff] %vm188, %v229
    $region25: #{tpu_custom_call.1} parent=1 // pred_fallthru
      _
    // Predicated region
    $region26: #{tpu_custom_call.1} parent=1 // pred_check
      _
    $region27: #{tpu_custom_call.1} parent=1 // pred_check_branch
      %233 = sbr.rel (0) target = $region29
    $region28: #{tpu_custom_call.1} parent=1 // pred_region
      _
    $region29: #{tpu_custom_call.1} parent=1 // pred_fallthru
      _
    // Predicated region
    $region30: #{tpu_custom_call.1} parent=1 // pred_check
      _
    $region31: #{tpu_custom_call.1} parent=1 // pred_check_branch
      %235 = sbr.rel (0) target = $region33
    $region32: #{tpu_custom_call.1} parent=1 // pred_region
      _
    $region33: #{tpu_custom_call.1} parent=1 // pred_fallthru
      _
    %236 = vsyncpa [#allocation6], 1
    %237 = vsyncpa [#allocation8], 1

</llo_original>
